<compile_context>
chip_gen: v5e
topology: v5e:2x2
jax: 0.10.0
libtpu: 0.0.40
codegen_flags: <defaults>
</compile_context>

<pallas_src>
import jax
import jax.numpy as jnp
from jax.experimental import pallas as pl
from jax.experimental.pallas import tpu as pltpu

BN_EPS = 1e-5  # nn.BatchNorm1d default eps


def _batchnorm(h, gamma, beta):
    """Train-mode BN (batch statistics), single pass, gamma*rsqrt folded."""
    inv_n = 1.0 / h.shape[0]
    mean = jnp.sum(h, axis=0, keepdims=True) * inv_n
    ex2 = jnp.sum(h * h, axis=0, keepdims=True) * inv_n
    var = jnp.maximum(ex2 - mean * mean, 0.0)     # guard f32 cancellation
    scale = gamma * jax.lax.rsqrt(var + BN_EPS)
    return (h - mean) * scale + beta


# ----------------------------------------------------------------------------
# Pallas kernel: per-N1-tile Linear1 -> ReLU -> BN1 -> partial Linear2, with
# the Linear2-bias/ReLU/BN2/Linear3 epilogue on the last grid step.
# ----------------------------------------------------------------------------
def special_token_head_kernel(xs_ref, xe_ref,              # VMEM [B, H] bf16
                              w1a_ref, w1b_ref,            # VMEM [H, tn1] bf16
                              bn1_ref,                     # VMEM [3, tn1] f32 (b1,g1,be1)
                              w2_ref,                      # VMEM [tn1, Hd] bf16
                              bn2_ref,                     # VMEM [3, Hd] f32 (b2,g2,be2)
                              w3_ref,                      # VMEM [Hd, out_pad] bf16
                              b3_ref,                      # VMEM [1, out_pad] f32
                              o_ref,                       # VMEM [B, out_pad] f32
                              h2_acc):                     # scratch [B, Hd] f32
    k = pl.program_id(0)
    B = xs_ref.shape[0]
    f32 = jnp.float32
    bf16 = jnp.bfloat16

    @pl.when(k == 0)
    def _():
        h2_acc[...] = jnp.zeros_like(h2_acc)

    b1 = bn1_ref[0:1, :]
    g1 = bn1_ref[1:2, :]
    be1 = bn1_ref[2:3, :]

    # Linear1 tile (split-K over start/end halves) -> ReLU -> BN1 (per-feature,
    # so tile-wise application is exact).
    h1 = (jnp.dot(xs_ref[...], w1a_ref[...], preferred_element_type=f32)
          + jnp.dot(xe_ref[...], w1b_ref[...], preferred_element_type=f32)
          + b1)
    h1 = jnp.maximum(h1, 0.0)
    if B != 1:                                   # static, mirrors `batch_size != 1`
        h1 = _batchnorm(h1, g1, be1)

    # Partial Linear2: this tile's columns of h1 are this tile's K-slice of W2.
    h2_acc[...] += jnp.dot(h1.astype(bf16), w2_ref[...], preferred_element_type=f32)

    @pl.when(k == pl.num_programs(0) - 1)
    def _():
        b2 = bn2_ref[0:1, :]
        g2 = bn2_ref[1:2, :]
        be2 = bn2_ref[2:3, :]
        h2 = jnp.maximum(h2_acc[...] + b2, 0.0)
        if B != 1:
            h2 = _batchnorm(h2, g2, be2)
        out = jnp.dot(h2.astype(bf16), w3_ref[...], preferred_element_type=f32) + b3_ref[...]
        o_ref[...] = out.astype(o_ref.dtype)


def _pick_tile(n, target=512):
    """Largest multiple of 128 dividing n and <= target; full dim otherwise."""
    if n % 128 != 0 or n <= target:
        return n
    best = n
    t = 128
    while t <= target:
        if n % t == 0:
            best = t
        t += 128
    return best if best <= target else n


# ----------------------------------------------------------------------------
# Wrapper
# ----------------------------------------------------------------------------
def special_token_forward(last_hidden_state, start_index, end_index, params):
    """last_hidden_state: [B, S, H] f32; start/end_index: [B] int32."""
    B, S, H = last_hidden_state.shape
    (w1, b1, g1, be1, w2, b2, g2, be2, w3, b3) = params
    hid2 = w1.shape[1]                     # 2 * hidden_dim
    hid = w2.shape[1]                      # hidden_dim
    out_dim = w3.shape[1]
    out_pad = pl.cdiv(out_dim, 128) * 128

    bf16 = jnp.bfloat16
    f32 = jnp.float32

    # Gather the two special-token rows per batch row OUTSIDE the kernel
    # (removes the serial in-body HBM round-trip + 2B DMA waits).
    idx = jnp.arange(B)
    xs = last_hidden_state[idx, start_index].astype(bf16)   # (B, H)
    xe = last_hidden_state[idx, end_index].astype(bf16)     # (B, H)

    # Split W1 into start-/end-token halves; stream weights as bf16.
    w1a = w1[:H].astype(bf16)
    w1b = w1[H:].astype(bf16)
    w2b = w2.astype(bf16)
    # Lane-dense output: pad W3 / b3 columns to a multiple of 128.
    w3p = jnp.zeros((hid, out_pad), bf16).at[:, :out_dim].set(w3.astype(bf16))
    b3p = jnp.zeros((1, out_pad), f32).at[:, :out_dim].set(b3)

    # Pack per-layer 1xN vectors -> fewer prologue DMA descriptors.
    bn1_pack = jnp.concatenate([b1, g1, be1], axis=0)        # (3, hid2)
    bn2_pack = jnp.concatenate([b2, g2, be2], axis=0)        # (3, hid)

    tn1 = _pick_tile(hid2)
    n_tiles = hid2 // tn1

    grid_spec = pltpu.PrefetchScalarGridSpec(
        num_scalar_prefetch=0,
        grid=(n_tiles,),
        in_specs=[
            pl.BlockSpec((B, H), lambda k: (0, 0)),          # xs
            pl.BlockSpec((B, H), lambda k: (0, 0)),          # xe
            pl.BlockSpec((H, tn1), lambda k: (0, k)),        # W1a tile
            pl.BlockSpec((H, tn1), lambda k: (0, k)),        # W1b tile
            pl.BlockSpec((3, tn1), lambda k: (0, k)),        # b1/g1/be1 tile
            pl.BlockSpec((tn1, hid), lambda k: (k, 0)),      # W2 K-slice
            pl.BlockSpec((3, hid), lambda k: (0, 0)),        # b2/g2/be2
            pl.BlockSpec((hid, out_pad), lambda k: (0, 0)),  # W3 (padded)
            pl.BlockSpec((1, out_pad), lambda k: (0, 0)),    # b3 (padded)
        ],
        out_specs=pl.BlockSpec((B, out_pad), lambda k: (0, 0)),
        scratch_shapes=[pltpu.VMEM((B, hid), f32)],          # Linear2 accumulator
    )

    out = pl.pallas_call(
        special_token_head_kernel,
        out_shape=jax.ShapeDtypeStruct((B, out_pad), f32),
        grid_spec=grid_spec,
        compiler_params=pltpu.CompilerParams(
            # N1 axis is a reduction for the Linear2 accumulator -> arbitrary.
            # TODO(synk): v7x dual-TC column split (parallel axis + h1 exchange)
            # would halve weight streaming time; single-TC kept for simplicity.
            dimension_semantics=("arbitrary",),
            vmem_limit_bytes=64 * 1024 * 1024,
        ),
    )(xs, xe, w1a, w1b, bn1_pack, w2b, bn2_pack, w3p, b3p)
    return out[:, :out_dim]


# ----------------------------------------------------------------------------
# Deterministic parameter init (shapes from SpecialTokenModel.__init__)
# Linear weights are stored transposed, i.e. [in, out], so y = x @ W + b.
# ----------------------------------------------------------------------------
def init_params(key, bert_hidden, hidden_dim, out_dim):
    ks = jax.random.split(key, 6)
    d1_in, d1_out = 2 * bert_hidden, 2 * hidden_dim
    w1 = jax.random.normal(ks[0], (d1_in, d1_out), jnp.float32) / jnp.sqrt(d1_in)
    b1 = 0.01 * jax.random.normal(ks[1], (1, d1_out), jnp.float32)
    g1 = jnp.ones((1, d1_out), jnp.float32)
    be1 = jnp.zeros((1, d1_out), jnp.float32)

    w2 = jax.random.normal(ks[2], (d1_out, hidden_dim), jnp.float32) / jnp.sqrt(d1_out)
    b2 = 0.01 * jax.random.normal(ks[3], (1, hidden_dim), jnp.float32)
    g2 = jnp.ones((1, hidden_dim), jnp.float32)
    be2 = jnp.zeros((1, hidden_dim), jnp.float32)

    w3 = jax.random.normal(ks[4], (hidden_dim, out_dim), jnp.float32) / jnp.sqrt(hidden_dim)
    b3 = 0.01 * jax.random.normal(ks[5], (1, out_dim), jnp.float32)
    return (w1, b1, g1, be1, w2, b2, g2, be2, w3, b3)


# Pure-JAX reference (same semantics as the PyTorch head; mirrors the kernel's
# bf16 weight/activation quantization for a tight numerical check).
def reference_forward(last_hidden_state, start_index, end_index, params):
    (w1, b1, g1, be1, w2, b2, g2, be2, w3, b3) = params
    B = last_hidden_state.shape[0]
    idx = jnp.arange(B)
    x = jnp.concatenate(
        [last_hidden_state[idx, start_index], last_hidden_state[idx, end_index]], axis=1)

    q = lambda a: a.astype(jnp.bfloat16).astype(jnp.float32)   # mimic kernel bf16

    def bn(h, g, b):
        m = jnp.mean(h, axis=0, keepdims=True)
        v = jnp.maximum(jnp.mean(h * h, axis=0, keepdims=True) - m * m, 0.0)
        return (h - m) * (g * jax.lax.rsqrt(v + BN_EPS)) + b

    h1 = jnp.maximum(q(x) @ q(w1) + b1, 0.0)
    if B != 1:
        h1 = bn(h1, g1, be1)
    h2 = jnp.maximum(q(h1) @ q(w2) + b2, 0.0)
    if B != 1:
        h2 = bn(h2, g2, be2)
    return q(h2) @ q(w3) + b3


if __name__ == "__main__":
    key = jax.random.PRNGKey(0)
    B, S = 8, 8                  # batch, token_len
    H_BERT = 32                  # stand-in for config.hidden_size
    HIDDEN_DIM, OUT_DIM = 32, 2  # predict() reads out[:, 1] -> out_dim >= 2

    k_hs, k_p, _ = jax.random.split(key, 3)

    # Stand-in for bert(input_ids, attention_mask)['last_hidden_state'].
    last_hidden_state = jax.random.normal(k_hs, (B, S, H_BERT), jnp.float32)
    start_index = jnp.arange(B, dtype=jnp.int32) % S
    end_index = (jnp.arange(B, dtype=jnp.int32) + 3) % S

    params = init_params(k_p, H_BERT, HIDDEN_DIM, OUT_DIM)

    out = special_token_forward(last_hidden_state, start_index, end_index, params)
    out = jax.block_until_ready(out)

    ref = reference_forward(last_hidden_state, start_index, end_index, params)
    assert out.shape == (B, OUT_DIM)
    assert jnp.allclose(out, ref, atol=2e-3, rtol=2e-3)

    print("KERNEL_OK")
</pallas_src>

<mosaic_0001>
module attributes {stable_mosaic.version = 11 : i64} {
  func.func @special_token_head_kernel(%arg0: i32, %arg1: memref<8x32xbf16, #tpu.memory_space<vmem>>, %arg2: memref<8x32xbf16, #tpu.memory_space<vmem>>, %arg3: memref<32x64xbf16, #tpu.memory_space<vmem>>, %arg4: memref<32x64xbf16, #tpu.memory_space<vmem>>, %arg5: memref<3x64xf32, #tpu.memory_space<vmem>>, %arg6: memref<64x32xbf16, #tpu.memory_space<vmem>>, %arg7: memref<3x32xf32, #tpu.memory_space<vmem>>, %arg8: memref<32x128xbf16, #tpu.memory_space<vmem>>, %arg9: memref<1x128xf32, #tpu.memory_space<vmem>>, %arg10: memref<8x128xf32, #tpu.memory_space<vmem>>, %arg11: memref<8x32xf32, #tpu.memory_space<vmem>>) attributes {dimension_semantics = [#tpu.dimension_semantics<arbitrary>], iteration_bounds = array<i64: 1>, scalar_prefetch = 0 : i64, scratch_operands = 1 : i64, tpu.core_type = #tpu.core_type<tc>, window_params = [{pipeline_mode = #tpu.pipeline_mode<synchronous>, transform_indices = @transform_0, window_bounds = array<i64: 8, 32>}, {pipeline_mode = #tpu.pipeline_mode<synchronous>, transform_indices = @transform_1, window_bounds = array<i64: 8, 32>}, {transform_indices = @transform_2, window_bounds = array<i64: 32, 64>}, {transform_indices = @transform_3, window_bounds = array<i64: 32, 64>}, {transform_indices = @transform_4, window_bounds = array<i64: 3, 64>}, {transform_indices = @transform_5, window_bounds = array<i64: 64, 32>}, {pipeline_mode = #tpu.pipeline_mode<synchronous>, transform_indices = @transform_6, window_bounds = array<i64: 3, 32>}, {pipeline_mode = #tpu.pipeline_mode<synchronous>, transform_indices = @transform_7, window_bounds = array<i64: 32, 128>}, {pipeline_mode = #tpu.pipeline_mode<synchronous>, transform_indices = @transform_8, window_bounds = array<i64: 1, 128>}, {pipeline_mode = #tpu.pipeline_mode<synchronous>, transform_indices = @transform_9, window_bounds = array<i64: 8, 128>}]} {
    %c0_i32 = arith.constant 0 : i32
    %0 = arith.cmpi eq, %arg0, %c0_i32 : i32
    %1 = arith.extui %0 : i1 to i32
    %c0_i32_0 = arith.constant 0 : i32
    %2 = arith.cmpi ne, %1, %c0_i32_0 : i32
    scf.if %2 {
      %cst_29 = arith.constant 0.000000e+00 : f32
      %49 = vector.broadcast %cst_29 : f32 to vector<8x32xf32>
      %c0_30 = arith.constant 0 : index
      %c0_31 = arith.constant 0 : index
      %50 = vector.load %arg11[%c0_30, %c0_31] : memref<8x32xf32, #tpu.memory_space<vmem>>, vector<8x32xf32>
      tpu.vector_store %arg11[%c0_30, %c0_31], %49 {strides = array<i32>} : memref<8x32xf32, #tpu.memory_space<vmem>>, vector<8x32xf32>,
    } else {
    }
    %c0 = arith.constant 0 : index
    %c0_1 = arith.constant 0 : index
    %3 = vector.load %arg5[%c0, %c0_1] : memref<3x64xf32, #tpu.memory_space<vmem>>, vector<1x64xf32>
    %c1 = arith.constant 1 : index
    %c0_2 = arith.constant 0 : index
    %4 = vector.load %arg5[%c1, %c0_2] : memref<3x64xf32, #tpu.memory_space<vmem>>, vector<1x64xf32>
    %c2 = arith.constant 2 : index
    %c0_3 = arith.constant 0 : index
    %5 = vector.load %arg5[%c2, %c0_3] : memref<3x64xf32, #tpu.memory_space<vmem>>, vector<1x64xf32>
    %c0_4 = arith.constant 0 : index
    %c0_5 = arith.constant 0 : index
    %6 = vector.load %arg1[%c0_4, %c0_5] : memref<8x32xbf16, #tpu.memory_space<vmem>>, vector<8x32xbf16>
    %c0_6 = arith.constant 0 : index
    %c0_7 = arith.constant 0 : index
    %7 = vector.load %arg3[%c0_6, %c0_7] : memref<32x64xbf16, #tpu.memory_space<vmem>>, vector<32x64xbf16>
    %cst = arith.constant dense<0.000000e+00> : vector<8x64xf32>
    %8 = tpu.matmul %6, %7, %cst {dimension_numbers = #tpu.dot_dimension_numbers<[1], [0], [0], [1], [0, 0, 1, 1], [], []>} : vector<8x32xbf16>, vector<32x64xbf16>, vector<8x64xf32> -> vector<8x64xf32>
    %c0_8 = arith.constant 0 : index
    %c0_9 = arith.constant 0 : index
    %9 = vector.load %arg2[%c0_8, %c0_9] : memref<8x32xbf16, #tpu.memory_space<vmem>>, vector<8x32xbf16>
    %c0_10 = arith.constant 0 : index
    %c0_11 = arith.constant 0 : index
    %10 = vector.load %arg4[%c0_10, %c0_11] : memref<32x64xbf16, #tpu.memory_space<vmem>>, vector<32x64xbf16>
    %cst_12 = arith.constant dense<0.000000e+00> : vector<8x64xf32>
    %11 = tpu.matmul %9, %10, %cst_12 {dimension_numbers = #tpu.dot_dimension_numbers<[1], [0], [0], [1], [0, 0, 1, 1], [], []>} : vector<8x32xbf16>, vector<32x64xbf16>, vector<8x64xf32> -> vector<8x64xf32>
    %12 = arith.addf %8, %11 : vector<8x64xf32>
    %13 = vector.broadcast %3 : vector<1x64xf32> to vector<8x64xf32>
    %14 = arith.addf %12, %13 : vector<8x64xf32>
    %cst_13 = arith.constant 0.000000e+00 : f32
    %15 = vector.broadcast %cst_13 : f32 to vector<8x64xf32>
    %16 = arith.maximumf %14, %15 : vector<8x64xf32>
    %cst_14 = arith.constant dense<0.000000e+00> : vector<64xf32>
    %17 = vector.multi_reduction <add>, %16, %cst_14 [0] : vector<8x64xf32> to vector<64xf32>
    %18 = vector.shape_cast %17 : vector<64xf32> to vector<1x64xf32>
    %cst_15 = arith.constant 1.250000e-01 : f32
    %19 = vector.broadcast %cst_15 : f32 to vector<1x64xf32>
    %20 = arith.mulf %18, %19 : vector<1x64xf32>
    %21 = arith.mulf %16, %16 : vector<8x64xf32>
    %cst_16 = arith.constant dense<0.000000e+00> : vector<64xf32>
    %22 = vector.multi_reduction <add>, %21, %cst_16 [0] : vector<8x64xf32> to vector<64xf32>
    %23 = vector.shape_cast %22 : vector<64xf32> to vector<1x64xf32>
    %cst_17 = arith.constant 1.250000e-01 : f32
    %24 = vector.broadcast %cst_17 : f32 to vector<1x64xf32>
    %25 = arith.mulf %23, %24 : vector<1x64xf32>
    %26 = arith.mulf %20, %20 : vector<1x64xf32>
    %27 = arith.subf %25, %26 : vector<1x64xf32>
    %cst_18 = arith.constant 0.000000e+00 : f32
    %28 = vector.broadcast %cst_18 : f32 to vector<1x64xf32>
    %29 = arith.maximumf %27, %28 : vector<1x64xf32>
    %cst_19 = arith.constant 9.99999974E-6 : f32
    %30 = vector.broadcast %cst_19 : f32 to vector<1x64xf32>
    %31 = arith.addf %29, %30 : vector<1x64xf32>
    %32 = math.rsqrt %31 : vector<1x64xf32>
    %33 = arith.mulf %4, %32 : vector<1x64xf32>
    %34 = vector.broadcast %20 : vector<1x64xf32> to vector<8x64xf32>
    %35 = arith.subf %16, %34 : vector<8x64xf32>
    %36 = vector.broadcast %33 : vector<1x64xf32> to vector<8x64xf32>
    %37 = arith.mulf %35, %36 : vector<8x64xf32>
    %38 = vector.broadcast %5 : vector<1x64xf32> to vector<8x64xf32>
    %39 = arith.addf %37, %38 : vector<8x64xf32>
    %c0_20 = arith.constant 0 : index
    %c0_21 = arith.constant 0 : index
    %40 = vector.load %arg11[%c0_20, %c0_21] : memref<8x32xf32, #tpu.memory_space<vmem>>, vector<8x32xf32>
    %41 = arith.truncf %39 : vector<8x64xf32> to vector<8x64xbf16>
    %c0_22 = arith.constant 0 : index
    %c0_23 = arith.constant 0 : index
    %42 = vector.load %arg6[%c0_22, %c0_23] : memref<64x32xbf16, #tpu.memory_space<vmem>>, vector<64x32xbf16>
    %cst_24 = arith.constant dense<0.000000e+00> : vector<8x32xf32>
    %43 = tpu.matmul %41, %42, %cst_24 {dimension_numbers = #tpu.dot_dimension_numbers<[1], [0], [0], [1], [0, 0, 1, 1], [], []>} : vector<8x64xbf16>, vector<64x32xbf16>, vector<8x32xf32> -> vector<8x32xf32>
    %44 = arith.addf %40, %43 : vector<8x32xf32>
    %c0_25 = arith.constant 0 : index
    %c0_26 = arith.constant 0 : index
    %45 = vector.load %arg11[%c0_25, %c0_26] : memref<8x32xf32, #tpu.memory_space<vmem>>, vector<8x32xf32>
    tpu.vector_store %arg11[%c0_25, %c0_26], %44 {strides = array<i32>} : memref<8x32xf32, #tpu.memory_space<vmem>>, vector<8x32xf32>,
    %c0_i32_27 = arith.constant 0 : i32
    %46 = arith.cmpi eq, %arg0, %c0_i32_27 : i32
    %47 = arith.extui %46 : i1 to i32
    %c0_i32_28 = arith.constant 0 : i32
    %48 = arith.cmpi ne, %47, %c0_i32_28 : i32
    scf.if %48 {
      %c0_29 = arith.constant 0 : index
      %c0_30 = arith.constant 0 : index
      %49 = vector.load %arg7[%c0_29, %c0_30] : memref<3x32xf32, #tpu.memory_space<vmem>>, vector<1x32xf32>
      %c1_31 = arith.constant 1 : index
      %c0_32 = arith.constant 0 : index
      %50 = vector.load %arg7[%c1_31, %c0_32] : memref<3x32xf32, #tpu.memory_space<vmem>>, vector<1x32xf32>
      %c2_33 = arith.constant 2 : index
      %c0_34 = arith.constant 0 : index
      %51 = vector.load %arg7[%c2_33, %c0_34] : memref<3x32xf32, #tpu.memory_space<vmem>>, vector<1x32xf32>
      %c0_35 = arith.constant 0 : index
      %c0_36 = arith.constant 0 : index
      %52 = vector.load %arg11[%c0_35, %c0_36] : memref<8x32xf32, #tpu.memory_space<vmem>>, vector<8x32xf32>
      %53 = vector.broadcast %49 : vector<1x32xf32> to vector<8x32xf32>
      %54 = arith.addf %52, %53 : vector<8x32xf32>
      %cst_37 = arith.constant 0.000000e+00 : f32
      %55 = vector.broadcast %cst_37 : f32 to vector<8x32xf32>
      %56 = arith.maximumf %54, %55 : vector<8x32xf32>
      %cst_38 = arith.constant dense<0.000000e+00> : vector<32xf32>
      %57 = vector.multi_reduction <add>, %56, %cst_38 [0] : vector<8x32xf32> to vector<32xf32>
      %58 = vector.shape_cast %57 : vector<32xf32> to vector<1x32xf32>
      %cst_39 = arith.constant 1.250000e-01 : f32
      %59 = vector.broadcast %cst_39 : f32 to vector<1x32xf32>
      %60 = arith.mulf %58, %59 : vector<1x32xf32>
      %61 = arith.mulf %56, %56 : vector<8x32xf32>
      %cst_40 = arith.constant dense<0.000000e+00> : vector<32xf32>
      %62 = vector.multi_reduction <add>, %61, %cst_40 [0] : vector<8x32xf32> to vector<32xf32>
      %63 = vector.shape_cast %62 : vector<32xf32> to vector<1x32xf32>
      %cst_41 = arith.constant 1.250000e-01 : f32
      %64 = vector.broadcast %cst_41 : f32 to vector<1x32xf32>
      %65 = arith.mulf %63, %64 : vector<1x32xf32>
      %66 = arith.mulf %60, %60 : vector<1x32xf32>
      %67 = arith.subf %65, %66 : vector<1x32xf32>
      %cst_42 = arith.constant 0.000000e+00 : f32
      %68 = vector.broadcast %cst_42 : f32 to vector<1x32xf32>
      %69 = arith.maximumf %67, %68 : vector<1x32xf32>
      %cst_43 = arith.constant 9.99999974E-6 : f32
      %70 = vector.broadcast %cst_43 : f32 to vector<1x32xf32>
      %71 = arith.addf %69, %70 : vector<1x32xf32>
      %72 = math.rsqrt %71 : vector<1x32xf32>
      %73 = arith.mulf %50, %72 : vector<1x32xf32>
      %74 = vector.broadcast %60 : vector<1x32xf32> to vector<8x32xf32>
      %75 = arith.subf %56, %74 : vector<8x32xf32>
      %76 = vector.broadcast %73 : vector<1x32xf32> to vector<8x32xf32>
      %77 = arith.mulf %75, %76 : vector<8x32xf32>
      %78 = vector.broadcast %51 : vector<1x32xf32> to vector<8x32xf32>
      %79 = arith.addf %77, %78 : vector<8x32xf32>
      %80 = arith.truncf %79 : vector<8x32xf32> to vector<8x32xbf16>
      %c0_44 = arith.constant 0 : index
      %c0_45 = arith.constant 0 : index
      %81 = vector.load %arg8[%c0_44, %c0_45] : memref<32x128xbf16, #tpu.memory_space<vmem>>, vector<32x128xbf16>
      %cst_46 = arith.constant dense<0.000000e+00> : vector<8x128xf32>
      %82 = tpu.matmul %80, %81, %cst_46 {dimension_numbers = #tpu.dot_dimension_numbers<[1], [0], [0], [1], [0, 0, 1, 1], [], []>} : vector<8x32xbf16>, vector<32x128xbf16>, vector<8x128xf32> -> vector<8x128xf32>
      %c0_47 = arith.constant 0 : index
      %c0_48 = arith.constant 0 : index
      %83 = vector.load %arg9[%c0_47, %c0_48] : memref<1x128xf32, #tpu.memory_space<vmem>>, vector<1x128xf32>
      %84 = vector.broadcast %83 : vector<1x128xf32> to vector<8x128xf32>
      %85 = arith.addf %82, %84 : vector<8x128xf32>
      %c0_49 = arith.constant 0 : index
      %c0_50 = arith.constant 0 : index
      %86 = vector.load %arg10[%c0_49, %c0_50] : memref<8x128xf32, #tpu.memory_space<vmem>>, vector<8x128xf32>
      tpu.vector_store %arg10[%c0_49, %c0_50], %85 {strides = array<i32>} : memref<8x128xf32, #tpu.memory_space<vmem>>, vector<8x128xf32>,
    } else {
    }
    return
  }
  func.func @transform_0(%arg0: i32) -> (i32, i32) {
    %c0_i32 = arith.constant 0 : i32
    %c0_i32_0 = arith.constant 0 : i32
    %c0_i32_1 = arith.constant 0 : i32
    return %c0_i32, %c0_i32_0 : i32, i32
  }
  func.func @transform_1(%arg0: i32) -> (i32, i32) {
    %c0_i32 = arith.constant 0 : i32
    %c0_i32_0 = arith.constant 0 : i32
    %c0_i32_1 = arith.constant 0 : i32
    return %c0_i32, %c0_i32_0 : i32, i32
  }
  func.func @transform_2(%arg0: i32) -> (i32, i32) {
    %c0_i32 = arith.constant 0 : i32
    %c0_i32_0 = arith.constant 0 : i32
    return %c0_i32, %arg0 : i32, i32
  }
  func.func @transform_3(%arg0: i32) -> (i32, i32) {
    %c0_i32 = arith.constant 0 : i32
    %c0_i32_0 = arith.constant 0 : i32
    return %c0_i32, %arg0 : i32, i32
  }
  func.func @transform_4(%arg0: i32) -> (i32, i32) {
    %c0_i32 = arith.constant 0 : i32
    %c0_i32_0 = arith.constant 0 : i32
    return %c0_i32, %arg0 : i32, i32
  }
  func.func @transform_5(%arg0: i32) -> (i32, i32) {
    %c0_i32 = arith.constant 0 : i32
    %c0_i32_0 = arith.constant 0 : i32
    return %arg0, %c0_i32 : i32, i32
  }
  func.func @transform_6(%arg0: i32) -> (i32, i32) {
    %c0_i32 = arith.constant 0 : i32
    %c0_i32_0 = arith.constant 0 : i32
    %c0_i32_1 = arith.constant 0 : i32
    return %c0_i32, %c0_i32_0 : i32, i32
  }
  func.func @transform_7(%arg0: i32) -> (i32, i32) {
    %c0_i32 = arith.constant 0 : i32
    %c0_i32_0 = arith.constant 0 : i32
    %c0_i32_1 = arith.constant 0 : i32
    return %c0_i32, %c0_i32_0 : i32, i32
  }
  func.func @transform_8(%arg0: i32) -> (i32, i32) {
    %c0_i32 = arith.constant 0 : i32
    %c0_i32_0 = arith.constant 0 : i32
    %c0_i32_1 = arith.constant 0 : i32
    return %c0_i32, %c0_i32_0 : i32, i32
  }
  func.func @transform_9(%arg0: i32) -> (i32, i32) {
    %c0_i32 = arith.constant 0 : i32
    %c0_i32_0 = arith.constant 0 : i32
    %c0_i32_1 = arith.constant 0 : i32
    return %c0_i32, %c0_i32_0 : i32, i32
  }
}

</mosaic_0001>

<llo_original>
// kernel: tpu_custom_call.1
$region0: #{tpu_custom_call.1}
  #allocation0 [shape = 'u32[]', space=smem, size = 0x4, offset = 0x4, fixed_abs, tag = 'smem constant byte address 0x4 - core index']
  #allocation1 [shape = 'u32[72,128]{1,0:T(1,128)}', space=vmem, size = 0x9000, scoped, tag = 'internal scratch']
  #allocation2 [shape = 'f32[8,32]{1,0:T(8,128)}', space=vmem, size = 0x1000, scoped, tag = 'scratch operand']
  %s0 = inlined_call_operand.hbm [shape: bf16[8,32], index: 0, kind: input, shape index: {}]
  %s1 = inlined_call_operand.hbm [shape: bf16[8,32], index: 1, kind: input, shape index: {}]
  %s2 = inlined_call_operand.vmem [shape: bf16[32,64], index: 2, kind: input, shape index: {}]
  %s3 = inlined_call_operand.vmem [shape: bf16[32,64], index: 3, kind: input, shape index: {}]
  %s4 = inlined_call_operand.hbm [shape: f32[3,64], index: 4, kind: input, shape index: {}]
  %s5 = inlined_call_operand.vmem [shape: bf16[64,32], index: 5, kind: input, shape index: {}]
  %s6 = inlined_call_operand.vmem [shape: f32[3,32], index: 6, kind: input, shape index: {}]
  %s7 = inlined_call_operand.vmem [shape: bf16[32,128], index: 7, kind: input, shape index: {}]
  %s8 = inlined_call_operand.vmem [shape: f32[1,128], index: 8, kind: input, shape index: {}]
  %s9 = inlined_call_operand.hbm [shape: f32[8,128], index: 9, kind: output, shape index: {}]
  %s10 = sld [smem:[#allocation0]]
  $region66: #{tpu_custom_call.1} parent=0
    _
  %s12 = ssub.s32 1, %s10
  %s13 = scalar_select 0, %s12, %s10
  $region1: #{tpu_custom_call.1} parent=0
    #allocation3 [shape = 'u8[2048]{0}', space=vmem, size = 0x800, scoped, tag = 'input window, operand 0, single buffered']
    #allocation4 [shape = 's32[1]{0}', space=sflag, size = 0x4, scoped, tag = 'scoped memory for tpu_custom_call.1']
    #allocation5 [shape = 's32[1]{0}', space=sflag, size = 0x4, scoped, tag = 'scoped memory for tpu_custom_call.1']
    #allocation6 [shape = 'u8[2048]{0}', space=vmem, size = 0x800, scoped, tag = 'input window, operand 1, single buffered']
    #allocation7 [shape = 's32[1]{0}', space=sflag, size = 0x4, scoped, tag = 'scoped memory for tpu_custom_call.1']
    #allocation8 [shape = 'u8[2048]{0}', space=vmem, size = 0x800, scoped, tag = 'input window, operand 4, single buffered']
    #allocation9 [shape = 'u8[4096]{0}', space=vmem, size = 0x1000, scoped, tag = 'output window, operand 0, single buffered']
    %14 = vsyncpa [#allocation4], 0
    %15 = vsyncpa [#allocation7], 0
    %16 = vsyncpa [#allocation5], 0
    // Predicated region
    $region2: #{tpu_custom_call.1} parent=1 // pred_check
      _
    $region3: #{tpu_custom_call.1} parent=1 // pred_check_branch
      %18 = sbr.rel (0) target = $region5
    $region4: #{tpu_custom_call.1} parent=1 // pred_region
      %20 = vsyncadd [#allocation4], 0
      %s22 = sshll.u32 %s0, 4
      %s23 = int_to_ptr.hbm [resolvable:$true] %s22
      %s24 = sshll.u32 [#allocation3], 4
      %s25 = int_to_ptr.vmem [resolvable:$true] %s24
      %27 = dma.hbm_to_vmem [thread:$0]  %s23, 64, %s25, [#allocation4]
    $region5: #{tpu_custom_call.1} parent=1 // pred_fallthru
      _
    // Predicated region
    $region6: #{tpu_custom_call.1} parent=1 // pred_check
      _
    $region7: #{tpu_custom_call.1} parent=1 // pred_check_branch
      %29 = sbr.rel (0) target = $region9
    $region8: #{tpu_custom_call.1} parent=1 // pred_region
      %31 = vsyncadd [#allocation7], 0
      %s33 = sshll.u32 %s1, 4
      %s34 = int_to_ptr.hbm [resolvable:$true] %s33
      %s35 = sshll.u32 [#allocation6], 4
      %s36 = int_to_ptr.vmem [resolvable:$true] %s35
      %38 = dma.hbm_to_vmem [thread:$0]  %s34, 64, %s36, [#allocation7]
    $region9: #{tpu_custom_call.1} parent=1 // pred_fallthru
      _
    // Predicated region
    $region10: #{tpu_custom_call.1} parent=1 // pred_check
      _
    $region11: #{tpu_custom_call.1} parent=1 // pred_check_branch
      %40 = sbr.rel (0) target = $region13
    $region12: #{tpu_custom_call.1} parent=1 // pred_region
      _
    $region13: #{tpu_custom_call.1} parent=1 // pred_fallthru
      _
    // Predicated region
    $region14: #{tpu_custom_call.1} parent=1 // pred_check
      _
    $region15: #{tpu_custom_call.1} parent=1 // pred_check_branch
      %42 = sbr.rel (0) target = $region17
    $region16: #{tpu_custom_call.1} parent=1 // pred_region
      _
    $region17: #{tpu_custom_call.1} parent=1 // pred_fallthru
      _
    // Predicated region
    $region18: #{tpu_custom_call.1} parent=1 // pred_check
      _
    $region19: #{tpu_custom_call.1} parent=1 // pred_check_branch
      %44 = sbr.rel (0) target = $region21
    $region20: #{tpu_custom_call.1} parent=1 // pred_region
      %46 = vsyncadd [#allocation7], 0
      %s48 = sshll.u32 %s4, 4
      %s49 = int_to_ptr.hbm [resolvable:$true] %s48
      %s50 = sshll.u32 [#allocation8], 4
      %s51 = int_to_ptr.vmem [resolvable:$true] %s50
      %53 = dma.hbm_to_vmem [thread:$0]  %s49, 64, %s51, [#allocation7]
    $region21: #{tpu_custom_call.1} parent=1 // pred_fallthru
      _
    // Predicated region
    $region22: #{tpu_custom_call.1} parent=1 // pred_check
      _
    $region23: #{tpu_custom_call.1} parent=1 // pred_check_branch
      %55 = sbr.rel (0) target = $region25
    $region24: #{tpu_custom_call.1} parent=1 // pred_region
      _
    $region25: #{tpu_custom_call.1} parent=1 // pred_fallthru
      _
    // Predicated region
    $region26: #{tpu_custom_call.1} parent=1 // pred_check
      _
    $region27: #{tpu_custom_call.1} parent=1 // pred_check_branch
      %57 = sbr.rel (0) target = $region29
    $region28: #{tpu_custom_call.1} parent=1 // pred_region
      _
    $region29: #{tpu_custom_call.1} parent=1 // pred_fallthru
      _
    // Predicated region
    $region30: #{tpu_custom_call.1} parent=1 // pred_check
      _
    $region31: #{tpu_custom_call.1} parent=1 // pred_check_branch
      %59 = sbr.rel (0) target = $region33
    $region32: #{tpu_custom_call.1} parent=1 // pred_region
      _
    $region33: #{tpu_custom_call.1} parent=1 // pred_fallthru
      _
    // Predicated region
    $region34: #{tpu_custom_call.1} parent=1 // pred_check
      _
    $region35: #{tpu_custom_call.1} parent=1 // pred_check_branch
      %61 = sbr.rel (0) target = $region37
    $region36: #{tpu_custom_call.1} parent=1 // pred_region
      _
    $region37: #{tpu_custom_call.1} parent=1 // pred_fallthru
      _
    // Predicated region
    $region38: #{tpu_custom_call.1} parent=1 // pred_check
      _
    $region39: #{tpu_custom_call.1} parent=1 // pred_check_branch
      %63 = sbr.rel (0) target = $region41
    $region40: #{tpu_custom_call.1} parent=1 // pred_region
      %65 = dma.done [#allocation4], 64
    $region41: #{tpu_custom_call.1} parent=1 // pred_fallthru
      _
    // Predicated region
    $region42: #{tpu_custom_call.1} parent=1 // pred_check
      _
    $region43: #{tpu_custom_call.1} parent=1 // pred_check_branch
      %67 = sbr.rel (0) target = $region45
    $region44: #{tpu_custom_call.1} parent=1 // pred_region
      %69 = dma.done [#allocation7], 64
    $region45: #{tpu_custom_call.1} parent=1 // pred_fallthru
      _
    // Predicated region
    $region46: #{tpu_custom_call.1} parent=1 // pred_check
      _
    $region47: #{tpu_custom_call.1} parent=1 // pred_check_branch
      %71 = sbr.rel (0) target = $region49
    $region48: #{tpu_custom_call.1} parent=1 // pred_region
      %73 = dma.done [#allocation7], 64
    $region49: #{tpu_custom_call.1} parent=1 // pred_fallthru
      _
    %p75 = scmp.eq.s32.totalorder 0, 0
    // Predicated region
    $region50: #{tpu_custom_call.1} parent=1 // pred_check
      %p76 = pneg %p75
    $region51: #{tpu_custom_call.1} parent=1 // pred_check_branch
      %78 = sbr.rel (%p76) target = $region53
    $region52: #{tpu_custom_call.1} parent=1 // pred_region
      %vm79 = vcmask 261120
      %80 = vst.msk [vmem:[#allocation2] sm:$0xff] %vm79, 0.0
    $region53: #{tpu_custom_call.1} parent=1 // pred_fallthru
      _
    %v81 = vld [vmem:[#allocation8] sm:$0x1]
    %v82 = vld [vmem:[#allocation8 + $0x1] sm:$0x1]
    %v83 = vld [vmem:[#allocation8 + $0x2] sm:$0x1]
    %v84 = vld [vmem:[#allocation3] sm:$0xf]
    %v85 = vld [vmem:[%s2] sm:$0xf]
    %v86 = vld [vmem:[%s2 + $0x4] sm:$0xf]
    %v87 = vld [vmem:[%s2 + $0x8] sm:$0xf]
    %v88 = vld [vmem:[%s2 + $0xc] sm:$0xf]
    %v89 = vld [vmem:[#allocation6] sm:$0xf]
    %v90 = vld [vmem:[%s3] sm:$0xf]
    %v91 = vld [vmem:[%s3 + $0x4] sm:$0xf]
    %v92 = vld [vmem:[%s3 + $0x8] sm:$0xf]
    %v93 = vld [vmem:[%s3 + $0xc] sm:$0xf]
    %v98 = vunpack.c.l.b16 %v90
    %v99 = vunpack.c.l.b16 %v91
    %v100 = vunpack.c.l.b16 %v92
    %v101 = vunpack.c.l.b16 %v93
    %v102 = vpack.c.b16 %v99, %v98
    %v103 = vpack.c.b16 %v101, %v100
    %vm106 = vcmask 261120
    %v108 = vsel %vm106, %v89, 0
    %110 = vmatpush.bf16.msra.mxu0 0
    %111 = vmatpush.bf16.msra.mxu0 0
    %112 = vmatpush.bf16.msra.mxu0 0
    %113 = vmatpush.bf16.msra.mxu0 0
    %114 = vmatpush.bf16.msra.mxu0 0
    %115 = vmatpush.bf16.msra.mxu0 0
    %116 = vmatpush.bf16.msra.mxu0 %v103
    %117 = vmatpush.bf16.msra.mxu0 %v102
    %118 = vmatmul.bf16.gmra.mxu0 %v108
    %v119 = vpop.f32.mrf.mxu0
    %v120 = vadd.f32 0.0, %v119
    %v121 = vpop.f32.mrf.mxu0
    %122 = vdwg.mxu0
    %v127 = vunpack.c.l.b16 %v85
    %v128 = vunpack.c.l.b16 %v86
    %v129 = vunpack.c.l.b16 %v87
    %v130 = vunpack.c.l.b16 %v88
    %v131 = vpack.c.b16 %v128, %v127
    %v132 = vpack.c.b16 %v130, %v129
    %v136 = vsel %vm106, %v84, 0
    %138 = vmatpush.bf16.msra.mxu0 0
    %139 = vmatpush.bf16.msra.mxu0 0
    %140 = vmatpush.bf16.msra.mxu0 0
    %141 = vmatpush.bf16.msra.mxu0 0
    %142 = vmatpush.bf16.msra.mxu0 0
    %143 = vmatpush.bf16.msra.mxu0 0
    %144 = vmatpush.bf16.msra.mxu0 %v132
    %145 = vmatpush.bf16.msra.mxu0 %v131
    %146 = vmatmul.bf16.gmra.mxu0 %v136
    %v147 = vpop.f32.mrf.mxu0
    %v148 = vadd.f32 %v120, %v147
    %v149 = vpop.f32.mrf.mxu0
    %150 = vdwg.mxu0
    %v151 = vperm.slane %v81, 0
    %v152 = vadd.f32 %v148, %v151
    %v153 = vmax.f32 %v152, 0.0
    %vm154 = vcmask 523264
    %v155 = vsel %vm154, %v153, 0.0
    %v156 = vrot.slane %v155, 4
    %v157 = vadd.f32 %v155, %v156
    %v158 = vrot.slane %v157, 2
    %v159 = vadd.f32 %v157, %v158
    %v160 = vrot.slane %v159, 1
    %v161 = vadd.f32 %v159, %v160
    %v162 = vmul.f32 %v161, 0.125
    %v163 = vmul.f32 %v153, %v153
    %v164 = vsel %vm154, %v163, 0.0
    %v165 = vrot.slane %v164, 4
    %v166 = vadd.f32 %v164, %v165
    %v167 = vrot.slane %v166, 2
    %v168 = vadd.f32 %v166, %v167
    %v169 = vrot.slane %v168, 1
    %v170 = vadd.f32 %v168, %v169
    %v171 = vmul.f32 %v170, 0.125
    %v172 = vmul.f32 %v162, %v162
    %v173 = vsub.f32 %v171, %v172
    %v174 = vmax.f32 %v173, 0.0
    %v175 = vadd.f32 %v174, 1e-05
    %v176 = vrsqrt.pop %v175
    %v177 = vmul.f32 %v176, %v175
    %v178 = vmul.f32 %v177, %v176
    %v179 = vmul.f32 0.5, %v178
    %v180 = vsub.f32 1.5, %v179
    %v181 = vmul.f32 %v176, %v180
    %vm182 = vweird.f32 %v175
    %vm183 = vweird.f32 %v176
    %vm184 = vmor %vm182, %vm183
    %v185 = vsel %vm184, %v176, %v181
    %v186 = vmul.f32 %v82, %v185
    %v187 = vsub.f32 %v153, %v162
    %v188 = vperm.slane %v186, 0
    %v189 = vmul.f32 %v187, %v188
    %v190 = vperm.slane %v83, 0
    %v191 = vadd.f32 %v189, %v190
    %v192 = vld [vmem:[#allocation2] sm:$0xff]
    %v193 = vpack.c.bf16 %v191, %v191
    %v194 = vld [vmem:[%s5] sm:$0xf]
    %v195 = vld [vmem:[%s5 + $0x4] sm:$0xf]
    %v196 = vld [vmem:[%s5 + $0x8] sm:$0xf]
    %v197 = vld [vmem:[%s5 + $0xc] sm:$0xf]
    %v198 = vld [vmem:[%s5 + $0x10] sm:$0xf]
    %v199 = vld [vmem:[%s5 + $0x14] sm:$0xf]
    %v200 = vld [vmem:[%s5 + $0x18] sm:$0xf]
    %v201 = vld [vmem:[%s5 + $0x1c] sm:$0xf]
    %v210 = vunpack.c.l.b16 %v194
    %v211 = vunpack.c.l.b16 %v195
    %v212 = vunpack.c.l.b16 %v196
    %v213 = vunpack.c.l.b16 %v197
    %v214 = vunpack.c.l.b16 %v198
    %v215 = vunpack.c.l.b16 %v199
    %v216 = vunpack.c.l.b16 %v200
    %v217 = vunpack.c.l.b16 %v201
    %v218 = vpack.c.b16 %v211, %v210
    %v219 = vpack.c.b16 %v213, %v212
    %v220 = vpack.c.b16 %v215, %v214
    %v221 = vpack.c.b16 %v217, %v216
    %v227 = vsel %vm154, %v193, 0
    %229 = vmatpush.bf16.msra.mxu0 0
    %230 = vmatpush.bf16.msra.mxu0 0
    %231 = vmatpush.bf16.msra.mxu0 0
    %232 = vmatpush.bf16.msra.mxu0 0
    %233 = vmatpush.bf16.msra.mxu0 %v221
    %234 = vmatpush.bf16.msra.mxu0 %v220
    %235 = vmatpush.bf16.msra.mxu0 %v219
    %236 = vmatpush.bf16.msra.mxu0 %v218
    %237 = vmatmul.bf16.gmra.mxu0 %v227
    %v238 = vpop.f32.mrf.mxu0
    %v239 = vadd.f32 0.0, %v238
    %v240 = vpop.f32.mrf.mxu0
    %241 = vdwg.mxu0
    %v242 = vadd.f32 %v192, %v239
    %243 = vst.msk [vmem:[#allocation2] sm:$0xff] %vm106, %v242
    // Predicated region
    $region54: #{tpu_custom_call.1} parent=1 // pred_check
      %p244 = pneg %p75
    $region55: #{tpu_custom_call.1} parent=1 // pred_check_branch
      %246 = sbr.rel (%p244) target = $region57
    $region56: #{tpu_custom_call.1} parent=1 // pred_region
      %v247 = vld [vmem:[%s6] sm:$0x1]
      %v248 = vld [vmem:[%s6 + $0x1] sm:$0x1]
      %v249 = vld [vmem:[%s6 + $0x2] sm:$0x1]
      %v250 = vld [vmem:[#allocation2] sm:$0xff]
      %v251 = vperm.slane %v247, 0
      %v252 = vadd.f32 %v250, %v251
      %v253 = vmax.f32 %v252, 0.0
      %v254 = vsel %vm106, %v253, 0.0
      %v255 = vrot.slane %v254, 4
      %v256 = vadd.f32 %v254, %v255
      %v257 = vrot.slane %v256, 2
      %v258 = vadd.f32 %v256, %v257
      %v259 = vrot.slane %v258, 1
      %v260 = vadd.f32 %v258, %v259
      %v261 = vmul.f32 %v260, 0.125
      %v262 = vmul.f32 %v253, %v253
      %v263 = vsel %vm106, %v262, 0.0
      %v264 = vrot.slane %v263, 4
      %v265 = vadd.f32 %v263, %v264
      %v266 = vrot.slane %v265, 2
      %v267 = vadd.f32 %v265, %v266
      %v268 = vrot.slane %v267, 1
      %v269 = vadd.f32 %v267, %v268
      %v270 = vmul.f32 %v269, 0.125
      %v271 = vmul.f32 %v261, %v261
      %v272 = vsub.f32 %v270, %v271
      %v273 = vmax.f32 %v272, 0.0
      %v274 = vadd.f32 %v273, 1e-05
      %v275 = vrsqrt.pop %v274
      %v276 = vmul.f32 %v275, %v274
      %v277 = vmul.f32 %v276, %v275
      %v278 = vmul.f32 0.5, %v277
      %v279 = vsub.f32 1.5, %v278
      %v280 = vmul.f32 %v275, %v279
      %vm281 = vweird.f32 %v274
      %vm282 = vweird.f32 %v275
      %vm283 = vmor %vm281, %vm282
      %v284 = vsel %vm283, %v275, %v280
      %v285 = vmul.f32 %v248, %v284
      %v286 = vsub.f32 %v253, %v261
      %v287 = vperm.slane %v285, 0
      %v288 = vmul.f32 %v286, %v287
      %v289 = vperm.slane %v249, 0
      %v290 = vadd.f32 %v288, %v289
      %v291 = vpack.c.bf16 %v290, %v290
      %v292 = vld [vmem:[%s7] sm:$0xf]
      %v293 = vld [vmem:[%s7 + $0x4] sm:$0xf]
      %v294 = vld [vmem:[%s7 + $0x8] sm:$0xf]
      %v295 = vld [vmem:[%s7 + $0xc] sm:$0xf]
      %v296 = vld [vmem:[%s8] sm:$0x1]
      %v298 = vperm.slane %v296, 0
      %v304 = vunpack.c.l.b16 %v292
      %v305 = vunpack.c.l.b16 %v293
      %v306 = vunpack.c.l.b16 %v294
      %v307 = vunpack.c.l.b16 %v295
      %v308 = vpack.c.b16 %v305, %v304
      %v309 = vpack.c.b16 %v307, %v306
      %v313 = vsel %vm106, %v291, 0
      %315 = vmatpush.bf16.msra.mxu0 0
      %316 = vmatpush.bf16.msra.mxu0 0
      %317 = vmatpush.bf16.msra.mxu0 0
      %318 = vmatpush.bf16.msra.mxu0 0
      %319 = vmatpush.bf16.msra.mxu0 0
      %320 = vmatpush.bf16.msra.mxu0 0
      %321 = vmatpush.bf16.msra.mxu0 %v309
      %322 = vmatpush.bf16.msra.mxu0 %v308
      %323 = vmatmul.bf16.gmra.mxu0 %v313
      %v324 = vpop.f32.mrf.mxu0
      %v325 = vadd.f32 %v298, %v324
      %v326 = vpop.f32.mrf.mxu0
      %327 = vdwg.mxu0
      %328 = vst [vmem:[#allocation9] sm:$0xff] %v325
    $region57: #{tpu_custom_call.1} parent=1 // pred_fallthru
      _
    // Predicated region
    $region58: #{tpu_custom_call.1} parent=1 // pred_check
      _
    $region59: #{tpu_custom_call.1} parent=1 // pred_check_branch
      %330 = sbr.rel (0) target = $region61
    $region60: #{tpu_custom_call.1} parent=1 // pred_region
      %332 = vsyncadd [#allocation5], 0
      %s334 = sshll.u32 [#allocation9], 4
      %s335 = int_to_ptr.vmem [resolvable:$true] %s334
      %s336 = sshll.u32 %s9, 4
      %s337 = int_to_ptr.hbm [resolvable:$true] %s336
      %339 = dma.vmem_to_hbm [thread:$0]  %s335, 128, %s337, [#allocation5]
    $region61: #{tpu_custom_call.1} parent=1 // pred_fallthru
      _
    // Predicated region
    $region62: #{tpu_custom_call.1} parent=1 // pred_check
      _
    $region63: #{tpu_custom_call.1} parent=1 // pred_check_branch
      %341 = sbr.rel (0) target = $region65
    $region64: #{tpu_custom_call.1} parent=1 // pred_region
      %343 = dma.done [#allocation5], 128
    $region65: #{tpu_custom_call.1} parent=1 // pred_fallthru
      _
    %344 = vsyncpa [#allocation4], 1
    %345 = vsyncpa [#allocation7], 1
    %346 = vsyncpa [#allocation5], 1

</llo_original>
